<compile_context>
chip_gen: v7x
topology: tpu7x:2x2x1
jax: 0.10.0
libtpu: 0.0.40
codegen_flags: <defaults>
</compile_context>

<pallas_src>
import functools

import jax
import jax.numpy as jnp
from jax.experimental import pallas as pl
from jax.experimental.pallas import tpu as pltpu

_LANE = 128
_SUBLANE = 8


def _round_up(n, m):
    return ((n + m - 1) // m) * m


def _make_actor_kernel(num_linear_layers):
    """Fused MLP kernel: one batch tile per grid step, params VMEM-resident."""

    def kernel(*refs):
        # refs = (x_ref, w0, b0, w1, b1, ..., w{L-1}, b{L-1}, out_ref)
        x_ref = refs[0]
        out_ref = refs[-1]
        h = x_ref[...]                       # f32 (or bf16 HBM stream) activation
        for i in range(num_linear_layers):
            w = refs[1 + 2 * i][...]
            b = refs[2 + 2 * i][...].astype(jnp.float32)
            # Cast only the matmul operands (bf16 MXU path); accumulate in f32,
            # keep bias add and ReLU in f32 (v5e-friendly).
            lhs = h if h.dtype == w.dtype else h.astype(w.dtype)
            h = jnp.dot(lhs, w, preferred_element_type=jnp.float32) + b
            if i < num_linear_layers - 1:
                h = jnp.maximum(h, 0.0)      # ReLU (Dropout = identity in eval)
        out_ref[...] = h.astype(out_ref.dtype)

    return kernel


def _vmem_estimate_bytes(tb, dims_eff, act_itemsize, param_itemsize):
    """Conservative VMEM footprint: double-buffered x/out tiles, params counted
    twice (double-buffer / v7x per-TensorCore duplication), ~3 live f32
    intermediates plus one low-precision matmul copy of h."""
    act_io = 2 * tb * (act_itemsize * dims_eff[0] + 4 * dims_eff[-1])
    w_bytes = sum(dims_eff[i] * dims_eff[i + 1]
                  for i in range(len(dims_eff) - 1)) * param_itemsize
    b_bytes = sum(dims_eff[1:]) * 4
    params = 2 * (w_bytes + b_bytes)
    widest = max(dims_eff[1:])
    inter = tb * widest * (3 * 4 + param_itemsize)
    return act_io + params + inter


def actor_network_forward(x, weights, biases, *, one_dec=False,
                          param_dtype=jnp.float32, block_batch=4096,
                          vmem_budget_bytes=40 * 1024 * 1024,
                          return_padded=False):
    """Pallas implementation of ActorNetwork.forward (eval mode).

    x       : [batch, in_dim]  (or [..., in_dim, vocab] when one_dec: argmax
              over the last axis is applied first, matching torch.argmax(x, -1))
    weights : list of [in_i, out_i] f32 arrays (transposed vs. PyTorch Linear)
    biases  : list of [1, out_i] f32 arrays
    """
    if one_dec:
        # torch.argmax(x, dim=-1): drop the trailing (one-hot / logits) axis.
        x = jnp.argmax(x, axis=-1)
    squeeze_batch = (x.ndim == 1)
    if squeeze_batch:            # unbatched sample, like torch.nn.Linear on 1-D
        x = x[None, :]
    x = x.astype(jnp.float32)
    assert x.ndim == 2, f"expected [batch, features] after one_dec glue, got {x.shape}"
    assert x.shape[-1] == weights[0].shape[0], (
        f"feature dim {x.shape[-1]} != first Linear in_dim {weights[0].shape[0]}")

    num_layers = len(weights)
    batch, in_dim = x.shape
    dims = [in_dim] + [w.shape[1] for w in weights]
    # Input feature dim stays at its natural width; only output dims of each
    # layer are padded to the 128-lane width (lane-dense matmuls + stores).
    dims_eff = [in_dim] + [_round_up(d, _LANE) for d in dims[1:]]
    out_dim = dims[-1]

    use_bf16 = jnp.dtype(param_dtype) == jnp.dtype(jnp.bfloat16)
    act_dtype = jnp.bfloat16 if use_bf16 else jnp.float32
    act_item = jnp.dtype(act_dtype).itemsize
    param_item = jnp.dtype(param_dtype).itemsize

    # ---- zero-pad parameter output dims to 128 lanes (numerics unchanged) ----
    padded_params = []
    for i, (w, b) in enumerate(zip(weights, biases)):
        wp = jnp.zeros((dims_eff[i], dims_eff[i + 1]), param_dtype)
        wp = wp.at[: w.shape[0], : w.shape[1]].set(w.astype(param_dtype))
        bp = jnp.zeros((1, dims_eff[i + 1]), jnp.float32)
        bp = bp.at[:, : b.shape[-1]].set(b.astype(jnp.float32).reshape(1, -1))
        padded_params.append((wp, bp))

    # ---- batch tiling: TB rows per grid step, capped by the VMEM budget ----
    tb = _round_up(min(block_batch, _round_up(batch, _SUBLANE)), _SUBLANE)
    while tb > _SUBLANE and _vmem_estimate_bytes(
            tb, dims_eff, act_item, param_item) > vmem_budget_bytes:
        tb = _round_up(tb // 2, _SUBLANE)
    padded_batch = _round_up(batch, tb)
    grid = (padded_batch // tb,)

    # Input stream at natural feature width; avoid the extra HBM copy entirely
    # when the batch is already tile-aligned and the dtype already matches.
    if padded_batch == batch and x.dtype == act_dtype:
        xp = x
    else:
        xp = jnp.zeros((padded_batch, in_dim), act_dtype).at[:batch].set(
            x.astype(act_dtype))

    operands = [xp]
    in_specs = [pl.BlockSpec((tb, in_dim), lambda i: (i, 0))]
    for wp, bp in padded_params:
        operands += [wp, bp]
        in_specs += [
            pl.BlockSpec(wp.shape, lambda i: (0, 0)),  # constant index -> resident
            pl.BlockSpec(bp.shape, lambda i: (0, 0)),
        ]
    out_specs = pl.BlockSpec((tb, dims_eff[-1]), lambda i: (i, 0))

    # Explicit VMEM limit: conservative estimate + 50% headroom, capped at
    # 48 MiB (safe under v7x's 64 MiB physical, overrides v5e's 16 MiB default).
    est = _vmem_estimate_bytes(tb, dims_eff, act_item, param_item)
    vmem_limit = int(min(48 * 1024 * 1024, max(int(est * 1.5), 16 * 1024 * 1024)))

    flops = 2 * padded_batch * sum(dims_eff[i] * dims_eff[i + 1]
                                   for i in range(num_layers))
    bytes_accessed = (padded_batch * in_dim * act_item
                      + padded_batch * dims_eff[-1] * 4
                      + sum(wp.size * wp.dtype.itemsize + bp.size * bp.dtype.itemsize
                            for wp, bp in padded_params))

    out = pl.pallas_call(
        _make_actor_kernel(num_layers),
        out_shape=jax.ShapeDtypeStruct((padded_batch, dims_eff[-1]), jnp.float32),
        grid=grid,
        in_specs=in_specs,
        out_specs=out_specs,
        compiler_params=pltpu.CompilerParams(
            dimension_semantics=("parallel",),       # v7x: shard tiles across both TCs
            vmem_limit_bytes=vmem_limit),
        cost_estimate=pl.CostEstimate(flops=int(flops), transcendentals=0,
                                      bytes_accessed=int(bytes_accessed)),
    )(*operands)

    if not return_padded:
        # Extra HBM pass; consumers that accept the padded (batch, 128) layout
        # should pass return_padded=True and fuse the slice downstream.
        out = out[:batch, :out_dim]
    if squeeze_batch:
        out = out[0]
    return out


def init_actor_params(key, in_dim, hidden_layer_units, out_dim):
    """Deterministic PyTorch-style uniform(-1/sqrt(fan_in), 1/sqrt(fan_in)) init."""
    dims = [in_dim] + list(hidden_layer_units) + [out_dim]
    weights, biases = [], []
    for i in range(len(dims) - 1):
        fan_in, fan_out = dims[i], dims[i + 1]
        key, kw, kb = jax.random.split(key, 3)
        bound = 1.0 / (fan_in ** 0.5)
        w = jax.random.uniform(kw, (fan_in, fan_out), jnp.float32, -bound, bound)
        b = jax.random.uniform(kb, (1, fan_out), jnp.float32, -bound, bound)
        weights.append(w)
        biases.append(b)
    return weights, biases


def _reference_forward(x, weights, biases, *, one_dec=False):
    """Pure-JAX reference matching the PyTorch module (eval mode)."""
    if one_dec:
        x = jnp.argmax(x, axis=-1)
    h = x.astype(jnp.float32)
    for i, (w, b) in enumerate(zip(weights, biases)):
        h = h @ w + b
        if i < len(weights) - 1:
            h = jnp.maximum(h, 0.0)
    return h


if __name__ == "__main__":
    # Small shapes consistent with the module: observation dim 16,
    # hidden_layer_units = [32, 32], action dim 8, batch 8.
    batch = 8
    obs_dim = 16
    hidden_layer_units = [32, 32]
    action_dim = 8

    key = jax.random.PRNGKey(0)
    key, kx, kx3 = jax.random.split(key, 3)
    x = jax.random.normal(kx, (batch, obs_dim), jnp.float32)

    weights, biases = init_actor_params(key, obs_dim, hidden_layer_units, action_dim)
    ref = _reference_forward(x, weights, biases, one_dec=False)

    # f32 parameters: tight parity check against the pure-JAX / PyTorch reference.
    fwd_f32 = jax.jit(functools.partial(actor_network_forward, one_dec=False,
                                        param_dtype=jnp.float32))
    out_f32 = jax.block_until_ready(fwd_f32(x, weights, biases))
    assert out_f32.shape == (batch, action_dim)
    assert jnp.allclose(out_f32, ref, atol=1e-5, rtol=1e-5), "f32 mismatch vs. reference"

    # bf16 params + bf16 x/activation HBM streams (v6e/v7x MXU fast path),
    # f32 accumulation inside the kernel, looser tolerance.
    fwd_bf16 = jax.jit(functools.partial(actor_network_forward, one_dec=False,
                                         param_dtype=jnp.bfloat16))
    out_bf16 = jax.block_until_ready(fwd_bf16(x, weights, biases))
    assert out_bf16.shape == (batch, action_dim)
    assert jnp.allclose(out_bf16, ref, atol=5e-2, rtol=5e-2), "bf16 mismatch vs. reference"

    # one_dec=True path: argmax over a trailing logits axis, then the same MLP.
    vocab = 5
    x3 = jax.random.normal(kx3, (batch, obs_dim, vocab), jnp.float32)
    ref_od = _reference_forward(x3, weights, biases, one_dec=True)
    fwd_od = jax.jit(functools.partial(actor_network_forward, one_dec=True,
                                       param_dtype=jnp.float32))
    out_od = jax.block_until_ready(fwd_od(x3, weights, biases))
    assert out_od.shape == (batch, action_dim)
    assert jnp.allclose(out_od, ref_od, atol=1e-3, rtol=1e-4), "one_dec mismatch vs. reference"

    print("KERNEL_OK")
</pallas_src>

<mosaic_0001>
module attributes {stable_mosaic.version = 11 : i64} {
  func.func @kernel(%arg0: i32, %arg1: memref<8x16xf32, #tpu.memory_space<vmem>>, %arg2: memref<16x128xf32, #tpu.memory_space<vmem>>, %arg3: memref<1x128xf32, #tpu.memory_space<vmem>>, %arg4: memref<128x128xf32, #tpu.memory_space<vmem>>, %arg5: memref<1x128xf32, #tpu.memory_space<vmem>>, %arg6: memref<128x128xf32, #tpu.memory_space<vmem>>, %arg7: memref<1x128xf32, #tpu.memory_space<vmem>>, %arg8: memref<8x128xf32, #tpu.memory_space<vmem>>) attributes {dimension_semantics = [#tpu.dimension_semantics<parallel>], iteration_bounds = array<i64: 1>, scalar_prefetch = 0 : i64, scratch_operands = 0 : i64, tpu.core_type = #tpu.core_type<tc>, window_params = [{transform_indices = @transform_0, window_bounds = array<i64: 8, 16>}, {pipeline_mode = #tpu.pipeline_mode<synchronous>, transform_indices = @transform_1, window_bounds = array<i64: 16, 128>}, {pipeline_mode = #tpu.pipeline_mode<synchronous>, transform_indices = @transform_2, window_bounds = array<i64: 1, 128>}, {pipeline_mode = #tpu.pipeline_mode<synchronous>, transform_indices = @transform_3, window_bounds = array<i64: 128, 128>}, {pipeline_mode = #tpu.pipeline_mode<synchronous>, transform_indices = @transform_4, window_bounds = array<i64: 1, 128>}, {pipeline_mode = #tpu.pipeline_mode<synchronous>, transform_indices = @transform_5, window_bounds = array<i64: 128, 128>}, {pipeline_mode = #tpu.pipeline_mode<synchronous>, transform_indices = @transform_6, window_bounds = array<i64: 1, 128>}, {transform_indices = @transform_7, window_bounds = array<i64: 8, 128>}]} {
    %c0 = arith.constant 0 : index
    %c0_0 = arith.constant 0 : index
    %0 = vector.load %arg1[%c0, %c0_0] : memref<8x16xf32, #tpu.memory_space<vmem>>, vector<8x16xf32>
    %c0_1 = arith.constant 0 : index
    %c0_2 = arith.constant 0 : index
    %1 = vector.load %arg2[%c0_1, %c0_2] : memref<16x128xf32, #tpu.memory_space<vmem>>, vector<16x128xf32>
    %c0_3 = arith.constant 0 : index
    %c0_4 = arith.constant 0 : index
    %2 = vector.load %arg3[%c0_3, %c0_4] : memref<1x128xf32, #tpu.memory_space<vmem>>, vector<1x128xf32>
    %cst = arith.constant dense<0.000000e+00> : vector<8x128xf32>
    %3 = tpu.matmul %0, %1, %cst {dimension_numbers = #tpu.dot_dimension_numbers<[1], [0], [0], [1], [0, 0, 1, 1], [], []>} : vector<8x16xf32>, vector<16x128xf32>, vector<8x128xf32> -> vector<8x128xf32>
    %4 = vector.broadcast %2 : vector<1x128xf32> to vector<8x128xf32>
    %5 = arith.addf %3, %4 : vector<8x128xf32>
    %cst_5 = arith.constant 0.000000e+00 : f32
    %6 = vector.broadcast %cst_5 : f32 to vector<8x128xf32>
    %7 = arith.maximumf %5, %6 : vector<8x128xf32>
    %c0_6 = arith.constant 0 : index
    %c0_7 = arith.constant 0 : index
    %8 = vector.load %arg4[%c0_6, %c0_7] : memref<128x128xf32, #tpu.memory_space<vmem>>, vector<128x128xf32>
    %c0_8 = arith.constant 0 : index
    %c0_9 = arith.constant 0 : index
    %9 = vector.load %arg5[%c0_8, %c0_9] : memref<1x128xf32, #tpu.memory_space<vmem>>, vector<1x128xf32>
    %cst_10 = arith.constant dense<0.000000e+00> : vector<8x128xf32>
    %10 = tpu.matmul %7, %8, %cst_10 {dimension_numbers = #tpu.dot_dimension_numbers<[1], [0], [0], [1], [0, 0, 1, 1], [], []>} : vector<8x128xf32>, vector<128x128xf32>, vector<8x128xf32> -> vector<8x128xf32>
    %11 = vector.broadcast %9 : vector<1x128xf32> to vector<8x128xf32>
    %12 = arith.addf %10, %11 : vector<8x128xf32>
    %cst_11 = arith.constant 0.000000e+00 : f32
    %13 = vector.broadcast %cst_11 : f32 to vector<8x128xf32>
    %14 = arith.maximumf %12, %13 : vector<8x128xf32>
    %c0_12 = arith.constant 0 : index
    %c0_13 = arith.constant 0 : index
    %15 = vector.load %arg6[%c0_12, %c0_13] : memref<128x128xf32, #tpu.memory_space<vmem>>, vector<128x128xf32>
    %c0_14 = arith.constant 0 : index
    %c0_15 = arith.constant 0 : index
    %16 = vector.load %arg7[%c0_14, %c0_15] : memref<1x128xf32, #tpu.memory_space<vmem>>, vector<1x128xf32>
    %cst_16 = arith.constant dense<0.000000e+00> : vector<8x128xf32>
    %17 = tpu.matmul %14, %15, %cst_16 {dimension_numbers = #tpu.dot_dimension_numbers<[1], [0], [0], [1], [0, 0, 1, 1], [], []>} : vector<8x128xf32>, vector<128x128xf32>, vector<8x128xf32> -> vector<8x128xf32>
    %18 = vector.broadcast %16 : vector<1x128xf32> to vector<8x128xf32>
    %19 = arith.addf %17, %18 : vector<8x128xf32>
    %c0_17 = arith.constant 0 : index
    %c0_18 = arith.constant 0 : index
    %20 = vector.load %arg8[%c0_17, %c0_18] : memref<8x128xf32, #tpu.memory_space<vmem>>, vector<8x128xf32>
    tpu.vector_store %arg8[%c0_17, %c0_18], %19 {strides = array<i32>} : memref<8x128xf32, #tpu.memory_space<vmem>>, vector<8x128xf32>,
    return
  }
  func.func @transform_0(%arg0: i32) -> (i32, i32) {
    %c0_i32 = arith.constant 0 : i32
    %c0_i32_0 = arith.constant 0 : i32
    return %arg0, %c0_i32 : i32, i32
  }
  func.func @transform_1(%arg0: i32) -> (i32, i32) {
    %c0_i32 = arith.constant 0 : i32
    %c0_i32_0 = arith.constant 0 : i32
    %c0_i32_1 = arith.constant 0 : i32
    return %c0_i32, %c0_i32_0 : i32, i32
  }
  func.func @transform_2(%arg0: i32) -> (i32, i32) {
    %c0_i32 = arith.constant 0 : i32
    %c0_i32_0 = arith.constant 0 : i32
    %c0_i32_1 = arith.constant 0 : i32
    return %c0_i32, %c0_i32_0 : i32, i32
  }
  func.func @transform_3(%arg0: i32) -> (i32, i32) {
    %c0_i32 = arith.constant 0 : i32
    %c0_i32_0 = arith.constant 0 : i32
    %c0_i32_1 = arith.constant 0 : i32
    return %c0_i32, %c0_i32_0 : i32, i32
  }
  func.func @transform_4(%arg0: i32) -> (i32, i32) {
    %c0_i32 = arith.constant 0 : i32
    %c0_i32_0 = arith.constant 0 : i32
    %c0_i32_1 = arith.constant 0 : i32
    return %c0_i32, %c0_i32_0 : i32, i32
  }
  func.func @transform_5(%arg0: i32) -> (i32, i32) {
    %c0_i32 = arith.constant 0 : i32
    %c0_i32_0 = arith.constant 0 : i32
    %c0_i32_1 = arith.constant 0 : i32
    return %c0_i32, %c0_i32_0 : i32, i32
  }
  func.func @transform_6(%arg0: i32) -> (i32, i32) {
    %c0_i32 = arith.constant 0 : i32
    %c0_i32_0 = arith.constant 0 : i32
    %c0_i32_1 = arith.constant 0 : i32
    return %c0_i32, %c0_i32_0 : i32, i32
  }
  func.func @transform_7(%arg0: i32) -> (i32, i32) {
    %c0_i32 = arith.constant 0 : i32
    %c0_i32_0 = arith.constant 0 : i32
    return %arg0, %c0_i32 : i32, i32
  }
}

</mosaic_0001>

<llo_original>
// kernel: actor_network_forward.1
$region0: #{actor_network_forward.1}
  #allocation0 [shape = 'u32[]', space=smem, size = 0x4, offset = 0x4, fixed_abs, tag = 'smem constant byte address 0x4 - core index']
  #allocation1 [shape = 'u32[144,128]{1,0:T(1,128)}', space=vmem, size = 0x12000, scoped, tag = 'internal scratch']
  %s0 = inlined_call_operand.vmem [shape: f32[8,16], index: 0, kind: input, shape index: {}]
  %s1 = inlined_call_operand.vmem [shape: f32[16,128], index: 1, kind: input, shape index: {}]
  %s2 = inlined_call_operand.vmem [shape: f32[1,128], index: 2, kind: input, shape index: {}]
  %s3 = inlined_call_operand.vmem [shape: f32[128,128], index: 3, kind: input, shape index: {}]
  %s4 = inlined_call_operand.vmem [shape: f32[1,128], index: 4, kind: input, shape index: {}]
  %s5 = inlined_call_operand.vmem [shape: f32[128,128], index: 5, kind: input, shape index: {}]
  %s6 = inlined_call_operand.vmem [shape: f32[1,128], index: 6, kind: input, shape index: {}]
  %s7 = inlined_call_operand.hbm [shape: f32[8,128], index: 7, kind: output, shape index: {}]
  %s8 = sld [smem:[#allocation0]]
  $region38: #{actor_network_forward.1} parent=0
    _
  %s10 = ssub.s32 1, %s8
  %s11 = scalar_select 0, %s10, %s8
  $region1: #{actor_network_forward.1} parent=0
    #allocation2 [shape = 'u8[4096]{0}', space=vmem, size = 0x1000, scoped, tag = 'output window, operand 0, single buffered']
    #allocation3 [shape = 's32[1]{0}', space=sflag, size = 0x4, scoped, tag = 'scoped memory for actor_network_forward.1']
    %12 = vsyncpa [#allocation3], 0
    // Predicated region
    $region2: #{actor_network_forward.1} parent=1 // pred_check
      _
    $region3: #{actor_network_forward.1} parent=1 // pred_check_branch
      %14 = sbr.rel (0) target = $region5
    $region4: #{actor_network_forward.1} parent=1 // pred_region
      _
    $region5: #{actor_network_forward.1} parent=1 // pred_fallthru
      _
    // Predicated region
    $region6: #{actor_network_forward.1} parent=1 // pred_check
      _
    $region7: #{actor_network_forward.1} parent=1 // pred_check_branch
      %16 = sbr.rel (0) target = $region9
    $region8: #{actor_network_forward.1} parent=1 // pred_region
      _
    $region9: #{actor_network_forward.1} parent=1 // pred_fallthru
      _
    // Predicated region
    $region10: #{actor_network_forward.1} parent=1 // pred_check
      _
    $region11: #{actor_network_forward.1} parent=1 // pred_check_branch
      %18 = sbr.rel (0) target = $region13
    $region12: #{actor_network_forward.1} parent=1 // pred_region
      _
    $region13: #{actor_network_forward.1} parent=1 // pred_fallthru
      _
    // Predicated region
    $region14: #{actor_network_forward.1} parent=1 // pred_check
      _
    $region15: #{actor_network_forward.1} parent=1 // pred_check_branch
      %20 = sbr.rel (0) target = $region17
    $region16: #{actor_network_forward.1} parent=1 // pred_region
      _
    $region17: #{actor_network_forward.1} parent=1 // pred_fallthru
      _
    // Predicated region
    $region18: #{actor_network_forward.1} parent=1 // pred_check
      _
    $region19: #{actor_network_forward.1} parent=1 // pred_check_branch
      %22 = sbr.rel (0) target = $region21
    $region20: #{actor_network_forward.1} parent=1 // pred_region
      _
    $region21: #{actor_network_forward.1} parent=1 // pred_fallthru
      _
    // Predicated region
    $region22: #{actor_network_forward.1} parent=1 // pred_check
      _
    $region23: #{actor_network_forward.1} parent=1 // pred_check_branch
      %24 = sbr.rel (0) target = $region25
    $region24: #{actor_network_forward.1} parent=1 // pred_region
      _
    $region25: #{actor_network_forward.1} parent=1 // pred_fallthru
      _
    // Predicated region
    $region26: #{actor_network_forward.1} parent=1 // pred_check
      _
    $region27: #{actor_network_forward.1} parent=1 // pred_check_branch
      %26 = sbr.rel (0) target = $region29
    $region28: #{actor_network_forward.1} parent=1 // pred_region
      _
    $region29: #{actor_network_forward.1} parent=1 // pred_fallthru
      _
    %v27 = vld [vmem:[%s0] sm:$0xff]
    %v28 = vld [vmem:[%s1] sm:$0xff]
    %v29 = vld [vmem:[%s1 + $0x8] sm:$0xff]
    %v30 = vld [vmem:[%s2] sm:$0x1]
    %v32 = vlaneseq
    %v33 = vshrl.u32 %v32, 7
    %v34 = vsub.s32 0, %v33
    %v35 = vrot.slane %v30, %v34
    %vm37 = vcmask 130048
    %v39 = vsel %vm37, %v27, 0
    %41 = vmatprep.subr.mxu0 0.0
    %42 = vmatpush1.msra.mxu0 %v28
    %43 = vmatprep.subr.mxu0 0.0
    %44 = vmatpush1.msra.mxu0 %v29
    %45 = vmatprep.subr.mxu0 0.0
    %46 = vmatpush1.msra.mxu0 0.0
    %47 = vmatprep.subr.mxu0 0.0
    %48 = vmatpush1.msra.mxu0 0.0
    %49 = vmatprep.subr.mxu0 0.0
    %50 = vmatpush1.msra.mxu0 0.0
    %51 = vmatprep.subr.mxu0 0.0
    %52 = vmatpush1.msra.mxu0 0.0
    %53 = vmatprep.subr.mxu0 0.0
    %54 = vmatpush1.msra.mxu0 0.0
    %55 = vmatprep.subr.mxu0 0.0
    %56 = vmatpush1.msra.mxu0 0.0
    %57 = vmatprep.subr.mxu0 0.0
    %58 = vmatpush1.msra.mxu0 0.0
    %59 = vmatprep.subr.mxu0 0.0
    %60 = vmatpush1.msra.mxu0 0.0
    %61 = vmatprep.subr.mxu0 0.0
    %62 = vmatpush1.msra.mxu0 0.0
    %63 = vmatprep.subr.mxu0 0.0
    %64 = vmatpush1.msra.mxu0 0.0
    %65 = vmatprep.subr.mxu0 0.0
    %66 = vmatpush1.msra.mxu0 0.0
    %67 = vmatprep.subr.mxu0 0.0
    %68 = vmatpush1.msra.mxu0 0.0
    %69 = vmatprep.subr.mxu0 0.0
    %70 = vmatpush1.msra.mxu0 0.0
    %71 = vmatprep.subr.mxu0 0.0
    %72 = vmatpush1.msra.mxu0 0.0
    %73 = vmatprep.subr.mxu0 0.0
    %74 = vmatpush1.msra.mxu0 0.0
    %75 = vmatprep.subr.mxu0 0.0
    %76 = vmatpush1.msra.mxu0 0.0
    %77 = vmatprep.subr.mxu0 0.0
    %78 = vmatpush1.msra.mxu0 0.0
    %79 = vmatprep.subr.mxu0 0.0
    %80 = vmatpush1.msra.mxu0 0.0
    %81 = vmatprep.subr.mxu0 0.0
    %82 = vmatpush1.msra.mxu0 0.0
    %83 = vmatprep.subr.mxu0 0.0
    %84 = vmatpush1.msra.mxu0 0.0
    %85 = vmatprep.subr.mxu0 0.0
    %86 = vmatpush1.msra.mxu0 0.0
    %87 = vmatprep.subr.mxu0 0.0
    %88 = vmatpush1.msra.mxu0 0.0
    %89 = vmatprep.subr.mxu0 0.0
    %90 = vmatpush1.msra.mxu0 0.0
    %91 = vmatprep.subr.mxu0 0.0
    %92 = vmatpush1.msra.mxu0 0.0
    %93 = vmatprep.subr.mxu0 0.0
    %94 = vmatpush1.msra.mxu0 0.0
    %95 = vmatprep.subr.mxu0 0.0
    %96 = vmatpush1.msra.mxu0 0.0
    %97 = vmatprep.subr.mxu0 0.0
    %98 = vmatpush1.msra.mxu0 0.0
    %99 = vmatprep.subr.mxu0 0.0
    %100 = vmatpush1.msra.mxu0 0.0
    %101 = vmatprep.subr.mxu0 0.0
    %102 = vmatpush1.msra.mxu0 0.0
    %103 = vmatprep.subr.mxu0 0.0
    %104 = vmatpush1.msra.mxu0 0.0
    %105 = vmatprep.mubr.f32.mxu0 0.0
    %106 = vmatmul.mubr.f32.gmra.mrb[0].mxu0 %v39
    %v107 = vpop.f32.mrb[0].mxu0
    %v108 = vadd.f32 %v35, %v107
    %v109 = vpop.f32.mrb[0].mxu0
    %110 = vdwg.mxu0
    %v111 = vmax.f32 %v108, 0.0
    %v112 = vld [vmem:[%s3] sm:$0xff]
    %v113 = vld [vmem:[%s3 + $0x8] sm:$0xff]
    %v114 = vld [vmem:[%s3 + $0x10] sm:$0xff]
    %v115 = vld [vmem:[%s3 + $0x18] sm:$0xff]
    %v116 = vld [vmem:[%s3 + $0x20] sm:$0xff]
    %v117 = vld [vmem:[%s3 + $0x28] sm:$0xff]
    %v118 = vld [vmem:[%s3 + $0x30] sm:$0xff]
    %v119 = vld [vmem:[%s3 + $0x38] sm:$0xff]
    %v120 = vld [vmem:[%s3 + $0x40] sm:$0xff]
    %v121 = vld [vmem:[%s3 + $0x48] sm:$0xff]
    %v122 = vld [vmem:[%s3 + $0x50] sm:$0xff]
    %v123 = vld [vmem:[%s3 + $0x58] sm:$0xff]
    %v124 = vld [vmem:[%s3 + $0x60] sm:$0xff]
    %v125 = vld [vmem:[%s3 + $0x68] sm:$0xff]
    %v126 = vld [vmem:[%s3 + $0x70] sm:$0xff]
    %v127 = vld [vmem:[%s3 + $0x78] sm:$0xff]
    %v128 = vld [vmem:[%s4] sm:$0x1]
    %v130 = vlaneseq
    %v131 = vshrl.u32 %v130, 7
    %v132 = vsub.s32 0, %v131
    %v133 = vrot.slane %v128, %v132
    %135 = vmatprep.subr.mxu0 0.0
    %136 = vmatpush1.msra.mxu0 %v112
    %137 = vmatprep.subr.mxu0 0.0
    %138 = vmatpush1.msra.mxu0 %v113
    %139 = vmatprep.subr.mxu0 0.0
    %140 = vmatpush1.msra.mxu0 %v114
    %141 = vmatprep.subr.mxu0 0.0
    %142 = vmatpush1.msra.mxu0 %v115
    %143 = vmatprep.subr.mxu0 0.0
    %144 = vmatpush1.msra.mxu0 %v116
    %145 = vmatprep.subr.mxu0 0.0
    %146 = vmatpush1.msra.mxu0 %v117
    %147 = vmatprep.subr.mxu0 0.0
    %148 = vmatpush1.msra.mxu0 %v118
    %149 = vmatprep.subr.mxu0 0.0
    %150 = vmatpush1.msra.mxu0 %v119
    %151 = vmatprep.subr.mxu0 0.0
    %152 = vmatpush1.msra.mxu0 %v120
    %153 = vmatprep.subr.mxu0 0.0
    %154 = vmatpush1.msra.mxu0 %v121
    %155 = vmatprep.subr.mxu0 0.0
    %156 = vmatpush1.msra.mxu0 %v122
    %157 = vmatprep.subr.mxu0 0.0
    %158 = vmatpush1.msra.mxu0 %v123
    %159 = vmatprep.subr.mxu0 0.0
    %160 = vmatpush1.msra.mxu0 %v124
    %161 = vmatprep.subr.mxu0 0.0
    %162 = vmatpush1.msra.mxu0 %v125
    %163 = vmatprep.subr.mxu0 0.0
    %164 = vmatpush1.msra.mxu0 %v126
    %165 = vmatprep.subr.mxu0 0.0
    %166 = vmatpush1.msra.mxu0 %v127
    %167 = vmatprep.subr.mxu0 0.0
    %168 = vmatpush1.msra.mxu0 0.0
    %169 = vmatprep.subr.mxu0 0.0
    %170 = vmatpush1.msra.mxu0 0.0
    %171 = vmatprep.subr.mxu0 0.0
    %172 = vmatpush1.msra.mxu0 0.0
    %173 = vmatprep.subr.mxu0 0.0
    %174 = vmatpush1.msra.mxu0 0.0
    %175 = vmatprep.subr.mxu0 0.0
    %176 = vmatpush1.msra.mxu0 0.0
    %177 = vmatprep.subr.mxu0 0.0
    %178 = vmatpush1.msra.mxu0 0.0
    %179 = vmatprep.subr.mxu0 0.0
    %180 = vmatpush1.msra.mxu0 0.0
    %181 = vmatprep.subr.mxu0 0.0
    %182 = vmatpush1.msra.mxu0 0.0
    %183 = vmatprep.subr.mxu0 0.0
    %184 = vmatpush1.msra.mxu0 0.0
    %185 = vmatprep.subr.mxu0 0.0
    %186 = vmatpush1.msra.mxu0 0.0
    %187 = vmatprep.subr.mxu0 0.0
    %188 = vmatpush1.msra.mxu0 0.0
    %189 = vmatprep.subr.mxu0 0.0
    %190 = vmatpush1.msra.mxu0 0.0
    %191 = vmatprep.subr.mxu0 0.0
    %192 = vmatpush1.msra.mxu0 0.0
    %193 = vmatprep.subr.mxu0 0.0
    %194 = vmatpush1.msra.mxu0 0.0
    %195 = vmatprep.subr.mxu0 0.0
    %196 = vmatpush1.msra.mxu0 0.0
    %197 = vmatprep.subr.mxu0 0.0
    %198 = vmatpush1.msra.mxu0 0.0
    %199 = vmatprep.mubr.f32.mxu0 0.0
    %200 = vmatmul.mubr.f32.gmra.mrb[0].mxu0 %v111
    %v201 = vpop.f32.mrb[0].mxu0
    %v202 = vadd.f32 %v133, %v201
    %v203 = vpop.f32.mrb[0].mxu0
    %204 = vdwg.mxu0
    %v205 = vmax.f32 %v202, 0.0
    %v206 = vld [vmem:[%s5] sm:$0xff]
    %v207 = vld [vmem:[%s5 + $0x8] sm:$0xff]
    %v208 = vld [vmem:[%s5 + $0x10] sm:$0xff]
    %v209 = vld [vmem:[%s5 + $0x18] sm:$0xff]
    %v210 = vld [vmem:[%s5 + $0x20] sm:$0xff]
    %v211 = vld [vmem:[%s5 + $0x28] sm:$0xff]
    %v212 = vld [vmem:[%s5 + $0x30] sm:$0xff]
    %v213 = vld [vmem:[%s5 + $0x38] sm:$0xff]
    %v214 = vld [vmem:[%s5 + $0x40] sm:$0xff]
    %v215 = vld [vmem:[%s5 + $0x48] sm:$0xff]
    %v216 = vld [vmem:[%s5 + $0x50] sm:$0xff]
    %v217 = vld [vmem:[%s5 + $0x58] sm:$0xff]
    %v218 = vld [vmem:[%s5 + $0x60] sm:$0xff]
    %v219 = vld [vmem:[%s5 + $0x68] sm:$0xff]
    %v220 = vld [vmem:[%s5 + $0x70] sm:$0xff]
    %v221 = vld [vmem:[%s5 + $0x78] sm:$0xff]
    %v222 = vld [vmem:[%s6] sm:$0x1]
    %v224 = vlaneseq
    %v225 = vshrl.u32 %v224, 7
    %v226 = vsub.s32 0, %v225
    %v227 = vrot.slane %v222, %v226
    %229 = vmatprep.subr.mxu0 0.0
    %230 = vmatpush1.msra.mxu0 %v206
    %231 = vmatprep.subr.mxu0 0.0
    %232 = vmatpush1.msra.mxu0 %v207
    %233 = vmatprep.subr.mxu0 0.0
    %234 = vmatpush1.msra.mxu0 %v208
    %235 = vmatprep.subr.mxu0 0.0
    %236 = vmatpush1.msra.mxu0 %v209
    %237 = vmatprep.subr.mxu0 0.0
    %238 = vmatpush1.msra.mxu0 %v210
    %239 = vmatprep.subr.mxu0 0.0
    %240 = vmatpush1.msra.mxu0 %v211
    %241 = vmatprep.subr.mxu0 0.0
    %242 = vmatpush1.msra.mxu0 %v212
    %243 = vmatprep.subr.mxu0 0.0
    %244 = vmatpush1.msra.mxu0 %v213
    %245 = vmatprep.subr.mxu0 0.0
    %246 = vmatpush1.msra.mxu0 %v214
    %247 = vmatprep.subr.mxu0 0.0
    %248 = vmatpush1.msra.mxu0 %v215
    %249 = vmatprep.subr.mxu0 0.0
    %250 = vmatpush1.msra.mxu0 %v216
    %251 = vmatprep.subr.mxu0 0.0
    %252 = vmatpush1.msra.mxu0 %v217
    %253 = vmatprep.subr.mxu0 0.0
    %254 = vmatpush1.msra.mxu0 %v218
    %255 = vmatprep.subr.mxu0 0.0
    %256 = vmatpush1.msra.mxu0 %v219
    %257 = vmatprep.subr.mxu0 0.0
    %258 = vmatpush1.msra.mxu0 %v220
    %259 = vmatprep.subr.mxu0 0.0
    %260 = vmatpush1.msra.mxu0 %v221
    %261 = vmatprep.subr.mxu0 0.0
    %262 = vmatpush1.msra.mxu0 0.0
    %263 = vmatprep.subr.mxu0 0.0
    %264 = vmatpush1.msra.mxu0 0.0
    %265 = vmatprep.subr.mxu0 0.0
    %266 = vmatpush1.msra.mxu0 0.0
    %267 = vmatprep.subr.mxu0 0.0
    %268 = vmatpush1.msra.mxu0 0.0
    %269 = vmatprep.subr.mxu0 0.0
    %270 = vmatpush1.msra.mxu0 0.0
    %271 = vmatprep.subr.mxu0 0.0
    %272 = vmatpush1.msra.mxu0 0.0
    %273 = vmatprep.subr.mxu0 0.0
    %274 = vmatpush1.msra.mxu0 0.0
    %275 = vmatprep.subr.mxu0 0.0
    %276 = vmatpush1.msra.mxu0 0.0
    %277 = vmatprep.subr.mxu0 0.0
    %278 = vmatpush1.msra.mxu0 0.0
    %279 = vmatprep.subr.mxu0 0.0
    %280 = vmatpush1.msra.mxu0 0.0
    %281 = vmatprep.subr.mxu0 0.0
    %282 = vmatpush1.msra.mxu0 0.0
    %283 = vmatprep.subr.mxu0 0.0
    %284 = vmatpush1.msra.mxu0 0.0
    %285 = vmatprep.subr.mxu0 0.0
    %286 = vmatpush1.msra.mxu0 0.0
    %287 = vmatprep.subr.mxu0 0.0
    %288 = vmatpush1.msra.mxu0 0.0
    %289 = vmatprep.subr.mxu0 0.0
    %290 = vmatpush1.msra.mxu0 0.0
    %291 = vmatprep.subr.mxu0 0.0
    %292 = vmatpush1.msra.mxu0 0.0
    %293 = vmatprep.mubr.f32.mxu0 0.0
    %294 = vmatmul.mubr.f32.gmra.mrb[0].mxu0 %v205
    %v295 = vpop.f32.mrb[0].mxu0
    %v296 = vadd.f32 %v227, %v295
    %v297 = vpop.f32.mrb[0].mxu0
    %298 = vdwg.mxu0
    %299 = vst [vmem:[#allocation2] sm:$0xff] %v296
    // Predicated region
    $region30: #{actor_network_forward.1} parent=1 // pred_check
      _
    $region31: #{actor_network_forward.1} parent=1 // pred_check_branch
      %301 = sbr.rel (0) target = $region33
    $region32: #{actor_network_forward.1} parent=1 // pred_region
      %s303 = ssub.s32 128, 128
      %304 = vsyncadd [#allocation3], %s303
      %s306 = sshll.u32 [#allocation2], 4
      %s307 = int_to_ptr.vmem [resolvable:$true] %s306
      %309 = dma.vmem_to_hbm [thread:$0]  %s307, 128, %s7, [#allocation3]
    $region33: #{actor_network_forward.1} parent=1 // pred_fallthru
      _
    // Predicated region
    $region34: #{actor_network_forward.1} parent=1 // pred_check
      _
    $region35: #{actor_network_forward.1} parent=1 // pred_check_branch
      %311 = sbr.rel (0) target = $region37
    $region36: #{actor_network_forward.1} parent=1 // pred_region
      %312 = dma.done [#allocation3], 128
    $region37: #{actor_network_forward.1} parent=1 // pred_fallthru
      _
    %313 = vsyncpa [#allocation3], 1

</llo_original>
